<compile_context>
chip_gen: v6e
topology: v6e:2x2x1
jax: 0.10.0
libtpu: 0.0.40
codegen_flags: <defaults>
</compile_context>

<pallas_src>
import jax
import jax.numpy as jnp
from jax.experimental import pallas as pl
from jax.experimental.pallas import tpu as pltpu


def _solu_kernel(x_ref, o_ref):
    # x_ref / o_ref: VMEM tiles of shape (block_rows, hidden).
    # Numerically stable softmax along the last (lane) axis, computed in f32.
    x = x_ref[...].astype(jnp.float32)
    m = jnp.max(x, axis=-1, keepdims=True)
    e = jnp.exp(x - m)
    s = jnp.sum(e, axis=-1, keepdims=True)
    inv = pl.reciprocal(s, approx=True)      # EUP vrcp; ample accuracy here
    o_ref[...] = (e * inv * x).astype(o_ref.dtype)


def _sublane(dtype):
    size = jnp.dtype(dtype).itemsize
    if size >= 4:
        return 8
    if size == 2:
        return 16
    return 32


def _round_up(n, mult):
    return ((int(n) + mult - 1) // mult) * mult


def _vmem_capacity_bytes():
    """Physical VMEM per TensorCore; falls back to 128 MiB if query fails."""
    try:
        return int(pltpu.get_tpu_info().vmem_capacity_bytes)
    except Exception:
        return 128 * 1024 * 1024


def _vmem_budget_and_limit():
    cap = _vmem_capacity_bytes()
    if cap <= 64 * 1024 * 1024:
        # v7x: 64 MiB / TC -> leave headroom for compiler internal scratch.
        return 22 * 1024 * 1024, 40 * 1024 * 1024
    # v5e / v6e: 128 MiB physical -> use fatter tiles.
    return 56 * 1024 * 1024, 96 * 1024 * 1024


def _pick_block_rows(rows, hidden, dtype, vmem_budget_bytes):
    """Byte-sized, sublane-aligned row tile for a mem-bound elementwise pass."""
    itemsize = jnp.dtype(dtype).itemsize
    sub = _sublane(dtype)
    row_in_bytes = max(hidden * itemsize, 1)

    # Working set per block row:
    #   double-buffered input + output io tiles: 2 * 2 * hidden * itemsize
    #   ~5 f32 tile-sized live temporaries:      20 * hidden
    per_row = 4 * hidden * itemsize + 20 * hidden

    # Largest block that fits the VMEM working-set budget.
    budget_rows = max(sub, (vmem_budget_bytes // max(per_row, 1)) // sub * sub)

    # Target ~4 MiB input tiles (amortizes ~0.35 us/step overhead).
    target_rows = max(sub, _round_up((4 * 1024 * 1024) // row_in_bytes, sub))
    br = min(budget_rows, target_rows)

    # Tile-bytes floor: don't shrink below ~2 MiB input tiles when chasing
    # grid length (but never exceed the budget cap).
    floor_rows = max(sub, _round_up((2 * 1024 * 1024) // row_in_bytes, sub))
    floor_rows = min(floor_rows, budget_rows)

    # Keep >= ~8 grid steps when rows allow: steady-state pipelining per core
    # and enough steps for both v7x TensorCores under dimension_semantics
    # ("parallel",).
    if rows >= 8 * sub:
        steps_rows = _round_up((rows + 7) // 8, sub)
        br = min(br, max(steps_rows, floor_rows))

    # Never larger than the (sublane-padded) number of rows actually present.
    br = min(br, _round_up(rows, sub))
    return int(max(sub, br))


@jax.jit
def solu_pallas(preacts):
    """SoLU forward: softmax(preacts, axis=-1) * preacts."""
    orig_shape = preacts.shape
    hidden = orig_shape[-1]
    x2d = preacts.reshape(-1, hidden)
    rows = x2d.shape[0]
    itemsize = jnp.dtype(preacts.dtype).itemsize

    vmem_budget, vmem_limit = _vmem_budget_and_limit()
    block_rows = _pick_block_rows(rows, hidden, preacts.dtype, vmem_budget)

    cost = pl.CostEstimate(
        flops=int(6 * rows * hidden),
        transcendentals=int(rows * hidden),
        bytes_accessed=int(2 * rows * hidden * itemsize),
    )

    out = pl.pallas_call(
        _solu_kernel,
        out_shape=jax.ShapeDtypeStruct((rows, hidden), preacts.dtype),
        grid_spec=pltpu.PrefetchScalarGridSpec(
            num_scalar_prefetch=0,
            grid=(pl.cdiv(rows, block_rows),),
            in_specs=[pl.BlockSpec((block_rows, hidden), lambda i: (i, 0))],
            out_specs=pl.BlockSpec((block_rows, hidden), lambda i: (i, 0)),
        ),
        compiler_params=pltpu.CompilerParams(
            dimension_semantics=("parallel",),
            vmem_limit_bytes=vmem_limit,
        ),
        cost_estimate=cost,
    )(x2d)

    return out.reshape(orig_shape)


def solu_reference(preacts):
    p = jax.nn.softmax(preacts.astype(jnp.float32), axis=-1)
    return (p * preacts.astype(jnp.float32)).astype(preacts.dtype)


if __name__ == "__main__":
    key = jax.random.PRNGKey(0)

    # small shapes consistent with the module: (batch=2, seq=8, hidden=32)
    x = jax.random.normal(key, (2, 8, 32), dtype=jnp.float32)
    y = solu_pallas(x)
    jax.block_until_ready(y)
    y_ref = solu_reference(x)
    assert y.shape == x.shape and y.dtype == x.dtype
    # tolerance accommodates the EUP approximate reciprocal in the denominator
    assert jnp.allclose(y, y_ref, atol=2e-3, rtol=2e-3)

    # second case exercising a partial (masked) last row block: rows = 21
    k2 = jax.random.PRNGKey(1)
    x2 = jax.random.normal(k2, (3, 7, 32), dtype=jnp.float32)
    y2 = solu_pallas(x2)
    jax.block_until_ready(y2)
    y2_ref = solu_reference(x2)
    assert y2.shape == x2.shape and y2.dtype == x2.dtype
    assert jnp.allclose(y2, y2_ref, atol=2e-3, rtol=2e-3)

    print("KERNEL_OK")
</pallas_src>

<mosaic_0001>
module attributes {stable_mosaic.version = 11 : i64} {
  func.func @_solu_kernel(%arg0: i32, %arg1: memref<16x32xf32, #tpu.memory_space<vmem>>, %arg2: memref<16x32xf32, #tpu.memory_space<vmem>>) attributes {dimension_semantics = [#tpu.dimension_semantics<parallel>], iteration_bounds = array<i64: 1>, scalar_prefetch = 0 : i64, scratch_operands = 0 : i64, tpu.core_type = #tpu.core_type<tc>, window_params = [{transform_indices = @transform_0, window_bounds = array<i64: 16, 32>}, {transform_indices = @transform_1, window_bounds = array<i64: 16, 32>}]} {
    %c0 = arith.constant 0 : index
    %c0_0 = arith.constant 0 : index
    %0 = vector.load %arg1[%c0, %c0_0] : memref<16x32xf32, #tpu.memory_space<vmem>>, vector<16x32xf32>
    %cst = arith.constant dense<0xFF800000> : vector<16xf32>
    %1 = vector.multi_reduction <maximumf>, %0, %cst [1] : vector<16x32xf32> to vector<16xf32>
    %2 = vector.shape_cast %1 : vector<16xf32> to vector<16x1xf32>
    %3 = vector.broadcast %2 : vector<16x1xf32> to vector<16x32xf32>
    %4 = arith.subf %0, %3 : vector<16x32xf32>
    %5 = math.exp %4 : vector<16x32xf32>
    %cst_1 = arith.constant dense<0.000000e+00> : vector<16xf32>
    %6 = vector.multi_reduction <add>, %5, %cst_1 [1] : vector<16x32xf32> to vector<16xf32>
    %7 = vector.shape_cast %6 : vector<16xf32> to vector<16x1xf32>
    %8 = tpu.reciprocal %7 {approx = true} : vector<16x1xf32> -> vector<16x1xf32>
    %9 = vector.broadcast %8 : vector<16x1xf32> to vector<16x32xf32>
    %10 = arith.mulf %5, %9 : vector<16x32xf32>
    %11 = arith.mulf %10, %0 : vector<16x32xf32>
    %c0_2 = arith.constant 0 : index
    %c0_3 = arith.constant 0 : index
    %12 = vector.load %arg2[%c0_2, %c0_3] : memref<16x32xf32, #tpu.memory_space<vmem>>, vector<16x32xf32>
    tpu.vector_store %arg2[%c0_2, %c0_3], %11 {strides = array<i32>} : memref<16x32xf32, #tpu.memory_space<vmem>>, vector<16x32xf32>,
    return
  }
  func.func @transform_0(%arg0: i32) -> (i32, i32) {
    %c0_i32 = arith.constant 0 : i32
    %c0_i32_0 = arith.constant 0 : i32
    return %arg0, %c0_i32 : i32, i32
  }
  func.func @transform_1(%arg0: i32) -> (i32, i32) {
    %c0_i32 = arith.constant 0 : i32
    %c0_i32_0 = arith.constant 0 : i32
    return %arg0, %c0_i32 : i32, i32
  }
}

</mosaic_0001>

<llo_original>
// kernel: solu_pallas.1
$region0: #{solu_pallas.1}
  #allocation0 [shape = 'u32[]', space=smem, size = 0x4, offset = 0x4, fixed_abs, tag = 'smem constant byte address 0x4 - core index']
  #allocation1 [shape = 'u32[144,128]{1,0:T(1,128)}', space=vmem, size = 0x12000, scoped, tag = 'internal scratch']
  %s0 = inlined_call_operand.hbm [shape: f32[16,32], index: 0, kind: input, shape index: {}]
  %s1 = inlined_call_operand.hbm [shape: f32[16,32], index: 1, kind: output, shape index: {}]
  %s2 = sld [smem:[#allocation0]]
  $region18: #{solu_pallas.1} parent=0
    _
  %s4 = ssub.s32 1, %s2
  %s5 = scalar_select 0, %s4, %s2
  $region1: #{solu_pallas.1} parent=0
    #allocation2 [shape = 'u8[8192]{0}', space=vmem, size = 0x2000, scoped, tag = 'input window, operand 0, single buffered']
    #allocation3 [shape = 's32[1]{0}', space=sflag, size = 0x4, scoped, tag = 'scoped memory for solu_pallas.1']
    #allocation4 [shape = 's32[1]{0}', space=sflag, size = 0x4, scoped, tag = 'scoped memory for solu_pallas.1']
    #allocation5 [shape = 'u8[8192]{0}', space=vmem, size = 0x2000, scoped, tag = 'output window, operand 0, single buffered']
    %6 = vsyncpa [#allocation3], 0
    %7 = vsyncpa [#allocation4], 0
    // Predicated region
    $region2: #{solu_pallas.1} parent=1 // pred_check
      _
    $region3: #{solu_pallas.1} parent=1 // pred_check_branch
      %9 = sbr.rel (0) target = $region5
    $region4: #{solu_pallas.1} parent=1 // pred_region
      %s11 = ssub.s32 256, 256
      %12 = vsyncadd [#allocation3], %s11
      %s13 = sshll.u32 [#allocation2], 4
      %s14 = int_to_ptr.vmem [resolvable:$true] %s13
      %19 = dma.hbm_to_vmem [thread:$0]  %s0, 256, %s14, [#allocation3], 128, 128, 8
    $region5: #{solu_pallas.1} parent=1 // pred_fallthru
      _
    // Predicated region
    $region6: #{solu_pallas.1} parent=1 // pred_check
      _
    $region7: #{solu_pallas.1} parent=1 // pred_check_branch
      %21 = sbr.rel (0) target = $region9
    $region8: #{solu_pallas.1} parent=1 // pred_region
      %22 = dma.done [#allocation3], 256
    $region9: #{solu_pallas.1} parent=1 // pred_fallthru
      _
    %v23 = vld [vmem:[#allocation2] sm:$0xff]
    %v24 = vld [vmem:[#allocation2 + $0x8] sm:$0xff]
    %vm25 = vcmask 261120
    %v26 = vsel %vm25, %v23, -inf
    %27 = vmax.xlane.f32.xlu0 %v26
    %v28 = vpop.xlane.xlu0 %27
    %v29 = vsel %vm25, %v24, -inf
    %30 = vmax.xlane.f32.xlu0 %v29
    %v31 = vpop.xlane.xlu0 %30
    %v32 = vsub.f32 %v23, %v28
    %v33 = vsub.f32 %v24, %v31
    %v34 = vmul.f32 %v32, 1.442695
    %v35 = vpow.pop %v34
    %v36 = vmul.f32 %v33, 1.442695
    %v37 = vpow.pop %v36
    %v38 = vsel %vm25, %v35, 0.0
    %39 = vadd.xlane.f32.xlu0 %v38
    %v40 = vpop.xlane.xlu0 %39
    %v41 = vsel %vm25, %v37, 0.0
    %42 = vadd.xlane.f32.xlu0 %v41
    %v43 = vpop.xlane.xlu0 %42
    %v44 = vrcp.pop %v40
    %v45 = vrcp.pop %v43
    %v46 = vmul.f32 %v35, %v44
    %v47 = vmul.f32 %v37, %v45
    %v48 = vmul.f32 %v46, %v23
    %v49 = vmul.f32 %v47, %v24
    %50 = vst.msk [vmem:[#allocation5] sm:$0xff] %vm25, %v48
    %51 = vst.msk [vmem:[#allocation5 + $0x8] sm:$0xff] %vm25, %v49
    // Predicated region
    $region10: #{solu_pallas.1} parent=1 // pred_check
      _
    $region11: #{solu_pallas.1} parent=1 // pred_check_branch
      %53 = sbr.rel (0) target = $region13
    $region12: #{solu_pallas.1} parent=1 // pred_region
      %s55 = ssub.s32 256, 256
      %56 = vsyncadd [#allocation4], %s55
      %s57 = sshll.u32 [#allocation5], 4
      %s58 = int_to_ptr.vmem [resolvable:$true] %s57
      %63 = dma.vmem_to_hbm [thread:$0]  %s58, 256, %s1, [#allocation4], 128, 128, 8
    $region13: #{solu_pallas.1} parent=1 // pred_fallthru
      _
    // Predicated region
    $region14: #{solu_pallas.1} parent=1 // pred_check
      _
    $region15: #{solu_pallas.1} parent=1 // pred_check_branch
      %65 = sbr.rel (0) target = $region17
    $region16: #{solu_pallas.1} parent=1 // pred_region
      %66 = dma.done [#allocation4], 256
    $region17: #{solu_pallas.1} parent=1 // pred_fallthru
      _
    %67 = vsyncpa [#allocation3], 1
    %68 = vsyncpa [#allocation4], 1

</llo_original>
